<compile_context>
chip_gen: v7x
topology: tpu7x:2x2x1
jax: 0.10.0
libtpu: 0.0.40
codegen_flags: <defaults>
</compile_context>

<pallas_src>
import jax
import jax.numpy as jnp
from jax.experimental import pallas as pl
from jax.experimental.pallas import tpu as pltpu


def _round_up(x, m):
    return (x + m - 1) // m * m


def _mcb_kernel(x1_ref, x2_ref, s1_ref, s2_ref,
                cf_ref, sf_ref, ci_ref, si_ref, out_ref):
    f32 = jnp.float32

    # Count sketches via dense 0/+-1 matmuls (MXU).
    px = jnp.dot(x1_ref[...], s1_ref[...], preferred_element_type=f32)
    py = jnp.dot(x2_ref[...], s2_ref[...], preferred_element_type=f32)

    cf = cf_ref[...]
    sf = sf_ref[...]

    # Half-spectrum real DFT (rfft) of px, py (MXU):
    #   X[k] = sum_j p[j] * exp(-2*pi*i*j*k/D),  k = 0 .. D//2
    x_re = jnp.dot(px, cf, preferred_element_type=f32)
    x_im = -jnp.dot(px, sf, preferred_element_type=f32)
    y_re = jnp.dot(py, cf, preferred_element_type=f32)
    y_im = -jnp.dot(py, sf, preferred_element_type=f32)

    # Elementwise complex multiply (VPU).
    z_re = x_re * y_re - x_im * y_im
    z_im = x_re * y_im + x_im * y_re

    # irfft: Hermitian weights w_k and the 1/D scale are pre-folded into
    # the inverse basis Ci / Si (no extra VPU multiply here).
    out = (jnp.dot(z_re, ci_ref[...], preferred_element_type=f32)
           - jnp.dot(z_im, si_ref[...], preferred_element_type=f32))

    out_ref[...] = out.astype(out_ref.dtype)


def _rdft_bases(D, D_pad, K_pad):
    """Half-spectrum DFT bases, padded to lane-dense shapes.

    Returns:
      cf, sf: (D_pad, K_pad)  forward rfft basis  cos/sin(2*pi*j*k/D)
      ci, si: (K_pad, D_pad)  inverse basis with (w_k / D) folded in,
              w_0 = 1, w_{D/2} = 1 (D even), otherwise w_k = 2.
    """
    f32 = jnp.float32
    K = D // 2 + 1
    j = jnp.arange(D, dtype=f32)
    k = jnp.arange(K, dtype=f32)
    ang = (2.0 * jnp.pi / D) * jnp.outer(j, k)          # (D, K)
    cf = jnp.cos(ang)
    sf = jnp.sin(ang)

    w = jnp.full((K,), 2.0, dtype=f32).at[0].set(1.0)
    if D % 2 == 0:
        w = w.at[K - 1].set(1.0)
    scale = (w / D)[:, None]                            # (K, 1)
    ci = scale * cf.T                                   # (K, D)
    si = scale * sf.T

    pad_fwd = ((0, D_pad - D), (0, K_pad - K))
    pad_inv = ((0, K_pad - K), (0, D_pad - D))
    return (jnp.pad(cf, pad_fwd), jnp.pad(sf, pad_fwd),
            jnp.pad(ci, pad_inv), jnp.pad(si, pad_inv))


def mcb_forward(x1, x2, s1_mat, s2_mat, output_size, *, b_tile=None):
    """x1: (B, C1), x2: (B, C2), s*_mat: dense (C, output_size) sketch matrices."""
    B, C1 = x1.shape
    B2, C2 = x2.shape
    assert B == B2
    D = int(output_size)
    K = D // 2 + 1

    # Lane-dense padding: output dim / spectral dim to multiples of 128,
    # batch to the B tile (sublane multiple).
    D_pad = _round_up(D, 128)
    K_pad = _round_up(K, 128)
    if b_tile is None:
        b_tile = min(_round_up(B, 8), 256)
    B_pad = _round_up(B, b_tile)

    f32 = jnp.float32
    x1p = jnp.pad(x1.astype(f32), ((0, B_pad - B), (0, 0)))
    x2p = jnp.pad(x2.astype(f32), ((0, B_pad - B), (0, 0)))
    s1p = jnp.pad(s1_mat.astype(f32), ((0, 0), (0, D_pad - D)))
    s2p = jnp.pad(s2_mat.astype(f32), ((0, 0), (0, D_pad - D)))

    cf, sf, ci, si = _rdft_bases(D, D_pad, K_pad)

    grid = (B_pad // b_tile,)

    flops = (2 * B_pad * (C1 + C2) * D_pad           # sketches
             + 4 * 2 * B_pad * D_pad * K_pad         # forward rfft matmuls
             + 6 * B_pad * K_pad                     # complex multiply
             + 2 * 2 * B_pad * K_pad * D_pad)        # inverse matmuls
    bytes_accessed = 4 * (B_pad * (C1 + C2)          # x1, x2
                          + (C1 + C2) * D_pad        # S1, S2
                          + 4 * D_pad * K_pad        # cf, sf, ci, si
                          + B_pad * D_pad)           # out

    out = pl.pallas_call(
        _mcb_kernel,
        out_shape=jax.ShapeDtypeStruct((B_pad, D_pad), f32),
        grid=grid,
        in_specs=[
            pl.BlockSpec((b_tile, C1), lambda i: (i, 0)),
            pl.BlockSpec((b_tile, C2), lambda i: (i, 0)),
            pl.BlockSpec((C1, D_pad), lambda i: (0, 0)),
            pl.BlockSpec((C2, D_pad), lambda i: (0, 0)),
            pl.BlockSpec((D_pad, K_pad), lambda i: (0, 0)),
            pl.BlockSpec((D_pad, K_pad), lambda i: (0, 0)),
            pl.BlockSpec((K_pad, D_pad), lambda i: (0, 0)),
            pl.BlockSpec((K_pad, D_pad), lambda i: (0, 0)),
        ],
        out_specs=pl.BlockSpec((b_tile, D_pad), lambda i: (i, 0)),
        compiler_params=pltpu.CompilerParams(
            dimension_semantics=("parallel",)),
        cost_estimate=pl.CostEstimate(
            flops=int(flops), transcendentals=0,
            bytes_accessed=int(bytes_accessed)),
    )(x1p, x2p, s1p, s2p, cf, sf, ci, si)

    return out[:B, :D]


def make_sketch_matrix(h, s, output_size):
    """Dense (input_size, output_size) matrix M with M[i, h[i]] = s[i]."""
    one_hot = jax.nn.one_hot(h, output_size, dtype=jnp.float32)
    return one_hot * s[:, None]


def reference_mcb(x1, x2, h1, s1, h2, s2, output_size):
    """Plain-JAX reference: count sketch + FFT-based circular convolution."""
    S1 = make_sketch_matrix(h1, s1, output_size)
    S2 = make_sketch_matrix(h2, s2, output_size)
    px = x1 @ S1
    py = x2 @ S2
    fx = jnp.fft.rfft(px, axis=-1)
    fy = jnp.fft.rfft(py, axis=-1)
    return jnp.fft.irfft(fx * fy, n=output_size, axis=-1)


if __name__ == "__main__":
    key = jax.random.PRNGKey(0)
    k1, k2, kh1, ks1, kh2, ks2 = jax.random.split(key, 6)

    B = 8             # flattened leading dims (e.g. batch)
    input_size = 16   # channels of x1 and x2
    output_size = 32  # sketch / output channels

    x1 = jax.random.normal(k1, (B, input_size), dtype=jnp.float32)
    x2 = jax.random.normal(k2, (B, input_size), dtype=jnp.float32)

    # Deterministic random sketch parameters (mirrors CountSketch.__init__).
    h1 = jax.random.randint(kh1, (input_size,), 0, output_size)
    s1 = 2.0 * jax.random.randint(ks1, (input_size,), 0, 2).astype(jnp.float32) - 1.0
    h2 = jax.random.randint(kh2, (input_size,), 0, output_size)
    s2 = 2.0 * jax.random.randint(ks2, (input_size,), 0, 2).astype(jnp.float32) - 1.0

    S1 = make_sketch_matrix(h1, s1, output_size)
    S2 = make_sketch_matrix(h2, s2, output_size)

    out = mcb_forward(x1, x2, S1, S2, output_size)
    out = jax.block_until_ready(out)

    ref = reference_mcb(x1, x2, h1, s1, h2, s2, output_size)
    assert out.shape == (B, output_size)
    assert jnp.allclose(out, ref, atol=2e-3, rtol=2e-3), (
        f"max err {jnp.max(jnp.abs(out - ref))}")

    # TODO(synk): backward pass (CompactBilinearPoolingFn.backward) not implemented;
    # forward-only per the spec.
    print("KERNEL_OK")
</pallas_src>

<mosaic_0001>
module attributes {stable_mosaic.version = 11 : i64} {
  func.func @_mcb_kernel(%arg0: i32, %arg1: memref<8x16xf32, #tpu.memory_space<vmem>>, %arg2: memref<8x16xf32, #tpu.memory_space<vmem>>, %arg3: memref<16x128xf32, #tpu.memory_space<vmem>>, %arg4: memref<16x128xf32, #tpu.memory_space<vmem>>, %arg5: memref<128x128xf32, #tpu.memory_space<vmem>>, %arg6: memref<128x128xf32, #tpu.memory_space<vmem>>, %arg7: memref<128x128xf32, #tpu.memory_space<vmem>>, %arg8: memref<128x128xf32, #tpu.memory_space<vmem>>, %arg9: memref<8x128xf32, #tpu.memory_space<vmem>>) attributes {dimension_semantics = [#tpu.dimension_semantics<parallel>], iteration_bounds = array<i64: 1>, scalar_prefetch = 0 : i64, scratch_operands = 0 : i64, tpu.core_type = #tpu.core_type<tc>, window_params = [{transform_indices = @transform_0, window_bounds = array<i64: 8, 16>}, {transform_indices = @transform_1, window_bounds = array<i64: 8, 16>}, {pipeline_mode = #tpu.pipeline_mode<synchronous>, transform_indices = @transform_2, window_bounds = array<i64: 16, 128>}, {pipeline_mode = #tpu.pipeline_mode<synchronous>, transform_indices = @transform_3, window_bounds = array<i64: 16, 128>}, {pipeline_mode = #tpu.pipeline_mode<synchronous>, transform_indices = @transform_4, window_bounds = array<i64: 128, 128>}, {pipeline_mode = #tpu.pipeline_mode<synchronous>, transform_indices = @transform_5, window_bounds = array<i64: 128, 128>}, {pipeline_mode = #tpu.pipeline_mode<synchronous>, transform_indices = @transform_6, window_bounds = array<i64: 128, 128>}, {pipeline_mode = #tpu.pipeline_mode<synchronous>, transform_indices = @transform_7, window_bounds = array<i64: 128, 128>}, {transform_indices = @transform_8, window_bounds = array<i64: 8, 128>}]} {
    %c0 = arith.constant 0 : index
    %c0_0 = arith.constant 0 : index
    %0 = vector.load %arg1[%c0, %c0_0] : memref<8x16xf32, #tpu.memory_space<vmem>>, vector<8x16xf32>
    %c0_1 = arith.constant 0 : index
    %c0_2 = arith.constant 0 : index
    %1 = vector.load %arg3[%c0_1, %c0_2] : memref<16x128xf32, #tpu.memory_space<vmem>>, vector<16x128xf32>
    %cst = arith.constant dense<0.000000e+00> : vector<8x128xf32>
    %2 = tpu.matmul %0, %1, %cst {dimension_numbers = #tpu.dot_dimension_numbers<[1], [0], [0], [1], [0, 0, 1, 1], [], []>} : vector<8x16xf32>, vector<16x128xf32>, vector<8x128xf32> -> vector<8x128xf32>
    %c0_3 = arith.constant 0 : index
    %c0_4 = arith.constant 0 : index
    %3 = vector.load %arg2[%c0_3, %c0_4] : memref<8x16xf32, #tpu.memory_space<vmem>>, vector<8x16xf32>
    %c0_5 = arith.constant 0 : index
    %c0_6 = arith.constant 0 : index
    %4 = vector.load %arg4[%c0_5, %c0_6] : memref<16x128xf32, #tpu.memory_space<vmem>>, vector<16x128xf32>
    %cst_7 = arith.constant dense<0.000000e+00> : vector<8x128xf32>
    %5 = tpu.matmul %3, %4, %cst_7 {dimension_numbers = #tpu.dot_dimension_numbers<[1], [0], [0], [1], [0, 0, 1, 1], [], []>} : vector<8x16xf32>, vector<16x128xf32>, vector<8x128xf32> -> vector<8x128xf32>
    %c0_8 = arith.constant 0 : index
    %c0_9 = arith.constant 0 : index
    %6 = vector.load %arg5[%c0_8, %c0_9] : memref<128x128xf32, #tpu.memory_space<vmem>>, vector<128x128xf32>
    %c0_10 = arith.constant 0 : index
    %c0_11 = arith.constant 0 : index
    %7 = vector.load %arg6[%c0_10, %c0_11] : memref<128x128xf32, #tpu.memory_space<vmem>>, vector<128x128xf32>
    %cst_12 = arith.constant dense<0.000000e+00> : vector<8x128xf32>
    %8 = tpu.matmul %2, %6, %cst_12 {dimension_numbers = #tpu.dot_dimension_numbers<[1], [0], [0], [1], [0, 0, 1, 1], [], []>} : vector<8x128xf32>, vector<128x128xf32>, vector<8x128xf32> -> vector<8x128xf32>
    %cst_13 = arith.constant dense<0.000000e+00> : vector<8x128xf32>
    %9 = tpu.matmul %2, %7, %cst_13 {dimension_numbers = #tpu.dot_dimension_numbers<[1], [0], [0], [1], [0, 0, 1, 1], [], []>} : vector<8x128xf32>, vector<128x128xf32>, vector<8x128xf32> -> vector<8x128xf32>
    %cst_14 = arith.constant 0.000000e+00 : f32
    %10 = vector.broadcast %cst_14 : f32 to vector<8x128xf32>
    %11 = arith.subf %10, %9 : vector<8x128xf32>
    %cst_15 = arith.constant dense<0.000000e+00> : vector<8x128xf32>
    %12 = tpu.matmul %5, %6, %cst_15 {dimension_numbers = #tpu.dot_dimension_numbers<[1], [0], [0], [1], [0, 0, 1, 1], [], []>} : vector<8x128xf32>, vector<128x128xf32>, vector<8x128xf32> -> vector<8x128xf32>
    %cst_16 = arith.constant dense<0.000000e+00> : vector<8x128xf32>
    %13 = tpu.matmul %5, %7, %cst_16 {dimension_numbers = #tpu.dot_dimension_numbers<[1], [0], [0], [1], [0, 0, 1, 1], [], []>} : vector<8x128xf32>, vector<128x128xf32>, vector<8x128xf32> -> vector<8x128xf32>
    %cst_17 = arith.constant 0.000000e+00 : f32
    %14 = vector.broadcast %cst_17 : f32 to vector<8x128xf32>
    %15 = arith.subf %14, %13 : vector<8x128xf32>
    %16 = arith.mulf %8, %12 : vector<8x128xf32>
    %17 = arith.mulf %11, %15 : vector<8x128xf32>
    %18 = arith.subf %16, %17 : vector<8x128xf32>
    %19 = arith.mulf %8, %15 : vector<8x128xf32>
    %20 = arith.mulf %11, %12 : vector<8x128xf32>
    %21 = arith.addf %19, %20 : vector<8x128xf32>
    %c0_18 = arith.constant 0 : index
    %c0_19 = arith.constant 0 : index
    %22 = vector.load %arg7[%c0_18, %c0_19] : memref<128x128xf32, #tpu.memory_space<vmem>>, vector<128x128xf32>
    %cst_20 = arith.constant dense<0.000000e+00> : vector<8x128xf32>
    %23 = tpu.matmul %18, %22, %cst_20 {dimension_numbers = #tpu.dot_dimension_numbers<[1], [0], [0], [1], [0, 0, 1, 1], [], []>} : vector<8x128xf32>, vector<128x128xf32>, vector<8x128xf32> -> vector<8x128xf32>
    %c0_21 = arith.constant 0 : index
    %c0_22 = arith.constant 0 : index
    %24 = vector.load %arg8[%c0_21, %c0_22] : memref<128x128xf32, #tpu.memory_space<vmem>>, vector<128x128xf32>
    %cst_23 = arith.constant dense<0.000000e+00> : vector<8x128xf32>
    %25 = tpu.matmul %21, %24, %cst_23 {dimension_numbers = #tpu.dot_dimension_numbers<[1], [0], [0], [1], [0, 0, 1, 1], [], []>} : vector<8x128xf32>, vector<128x128xf32>, vector<8x128xf32> -> vector<8x128xf32>
    %26 = arith.subf %23, %25 : vector<8x128xf32>
    %c0_24 = arith.constant 0 : index
    %c0_25 = arith.constant 0 : index
    %27 = vector.load %arg9[%c0_24, %c0_25] : memref<8x128xf32, #tpu.memory_space<vmem>>, vector<8x128xf32>
    tpu.vector_store %arg9[%c0_24, %c0_25], %26 {strides = array<i32>} : memref<8x128xf32, #tpu.memory_space<vmem>>, vector<8x128xf32>,
    return
  }
  func.func @transform_0(%arg0: i32) -> (i32, i32) {
    %c0_i32 = arith.constant 0 : i32
    %c0_i32_0 = arith.constant 0 : i32
    return %arg0, %c0_i32 : i32, i32
  }
  func.func @transform_1(%arg0: i32) -> (i32, i32) {
    %c0_i32 = arith.constant 0 : i32
    %c0_i32_0 = arith.constant 0 : i32
    return %arg0, %c0_i32 : i32, i32
  }
  func.func @transform_2(%arg0: i32) -> (i32, i32) {
    %c0_i32 = arith.constant 0 : i32
    %c0_i32_0 = arith.constant 0 : i32
    %c0_i32_1 = arith.constant 0 : i32
    return %c0_i32, %c0_i32_0 : i32, i32
  }
  func.func @transform_3(%arg0: i32) -> (i32, i32) {
    %c0_i32 = arith.constant 0 : i32
    %c0_i32_0 = arith.constant 0 : i32
    %c0_i32_1 = arith.constant 0 : i32
    return %c0_i32, %c0_i32_0 : i32, i32
  }
  func.func @transform_4(%arg0: i32) -> (i32, i32) {
    %c0_i32 = arith.constant 0 : i32
    %c0_i32_0 = arith.constant 0 : i32
    %c0_i32_1 = arith.constant 0 : i32
    return %c0_i32, %c0_i32_0 : i32, i32
  }
  func.func @transform_5(%arg0: i32) -> (i32, i32) {
    %c0_i32 = arith.constant 0 : i32
    %c0_i32_0 = arith.constant 0 : i32
    %c0_i32_1 = arith.constant 0 : i32
    return %c0_i32, %c0_i32_0 : i32, i32
  }
  func.func @transform_6(%arg0: i32) -> (i32, i32) {
    %c0_i32 = arith.constant 0 : i32
    %c0_i32_0 = arith.constant 0 : i32
    %c0_i32_1 = arith.constant 0 : i32
    return %c0_i32, %c0_i32_0 : i32, i32
  }
  func.func @transform_7(%arg0: i32) -> (i32, i32) {
    %c0_i32 = arith.constant 0 : i32
    %c0_i32_0 = arith.constant 0 : i32
    %c0_i32_1 = arith.constant 0 : i32
    return %c0_i32, %c0_i32_0 : i32, i32
  }
  func.func @transform_8(%arg0: i32) -> (i32, i32) {
    %c0_i32 = arith.constant 0 : i32
    %c0_i32_0 = arith.constant 0 : i32
    return %arg0, %c0_i32 : i32, i32
  }
}

</mosaic_0001>

<llo_original>
// kernel: tpu_custom_call.1
$region0: #{tpu_custom_call.1}
  #allocation0 [shape = 'u32[]', space=smem, size = 0x4, offset = 0x4, fixed_abs, tag = 'smem constant byte address 0x4 - core index']
  #allocation1 [shape = 'u32[144,128]{1,0:T(1,128)}', space=vmem, size = 0x12000, scoped, tag = 'internal scratch']
  %s0 = inlined_call_operand.hbm [shape: f32[8,16], index: 0, kind: input, shape index: {}]
  %s1 = inlined_call_operand.hbm [shape: f32[8,16], index: 1, kind: input, shape index: {}]
  %s2 = inlined_call_operand.hbm [shape: f32[16,128], index: 2, kind: input, shape index: {}]
  %s3 = inlined_call_operand.hbm [shape: f32[16,128], index: 3, kind: input, shape index: {}]
  %s4 = inlined_call_operand.hbm [shape: f32[128,128], index: 4, kind: input, shape index: {}]
  %s5 = inlined_call_operand.hbm [shape: f32[128,128], index: 5, kind: input, shape index: {}]
  %s6 = inlined_call_operand.hbm [shape: f32[128,128], index: 6, kind: input, shape index: {}]
  %s7 = inlined_call_operand.hbm [shape: f32[128,128], index: 7, kind: input, shape index: {}]
  %s8 = inlined_call_operand.hbm [shape: f32[8,128], index: 8, kind: output, shape index: {}]
  %s9 = sld [smem:[#allocation0]]
  $region74: #{tpu_custom_call.1} parent=0
    _
  %s11 = ssub.s32 1, %s9
  %s12 = scalar_select 0, %s11, %s9
  $region1: #{tpu_custom_call.1} parent=0
    #allocation2 [shape = 'u8[4096]{0}', space=vmem, size = 0x1000, scoped, tag = 'input window, operand 0, single buffered']
    #allocation3 [shape = 's32[1]{0}', space=sflag, size = 0x4, scoped, tag = 'scoped memory for tpu_custom_call.1']
    #allocation4 [shape = 's32[1]{0}', space=sflag, size = 0x4, scoped, tag = 'scoped memory for tpu_custom_call.1']
    #allocation5 [shape = 'u8[4096]{0}', space=vmem, size = 0x1000, scoped, tag = 'input window, operand 1, single buffered']
    #allocation6 [shape = 's32[1]{0}', space=sflag, size = 0x4, scoped, tag = 'scoped memory for tpu_custom_call.1']
    #allocation7 [shape = 'u8[8192]{0}', space=vmem, size = 0x2000, scoped, tag = 'input window, operand 2, single buffered']
    #allocation8 [shape = 'u8[8192]{0}', space=vmem, size = 0x2000, scoped, tag = 'input window, operand 3, single buffered']
    #allocation9 [shape = 's32[1]{0}', space=sflag, size = 0x4, scoped, tag = 'scoped memory for tpu_custom_call.1']
    #allocation10 [shape = 'u8[65536]{0}', space=vmem, size = 0x10000, scoped, tag = 'input window, operand 4, single buffered']
    #allocation11 [shape = 'u8[65536]{0}', space=vmem, size = 0x10000, scoped, tag = 'input window, operand 5, single buffered']
    #allocation12 [shape = 's32[1]{0}', space=sflag, size = 0x4, scoped, tag = 'scoped memory for tpu_custom_call.1']
    #allocation13 [shape = 'u8[65536]{0}', space=vmem, size = 0x10000, scoped, tag = 'input window, operand 6, single buffered']
    #allocation14 [shape = 'u8[65536]{0}', space=vmem, size = 0x10000, scoped, tag = 'input window, operand 7, single buffered']
    #allocation15 [shape = 's32[1]{0}', space=sflag, size = 0x4, scoped, tag = 'scoped memory for tpu_custom_call.1']
    #allocation16 [shape = 'u8[4096]{0}', space=vmem, size = 0x1000, scoped, tag = 'output window, operand 0, single buffered']
    %13 = vsyncpa [#allocation3], 0
    %14 = vsyncpa [#allocation6], 0
    %15 = vsyncpa [#allocation9], 0
    %16 = vsyncpa [#allocation12], 0
    %17 = vsyncpa [#allocation15], 0
    %18 = vsyncpa [#allocation4], 0
    // Predicated region
    $region2: #{tpu_custom_call.1} parent=1 // pred_check
      _
    $region3: #{tpu_custom_call.1} parent=1 // pred_check_branch
      %20 = sbr.rel (0) target = $region5
    $region4: #{tpu_custom_call.1} parent=1 // pred_region
      %s22 = ssub.s32 128, 128
      %23 = vsyncadd [#allocation3], %s22
      %s25 = sshll.u32 [#allocation2], 4
      %s26 = int_to_ptr.vmem [resolvable:$true] %s25
      %28 = dma.hbm_to_vmem [thread:$0]  %s0, 128, %s26, [#allocation3]
    $region5: #{tpu_custom_call.1} parent=1 // pred_fallthru
      _
    // Predicated region
    $region6: #{tpu_custom_call.1} parent=1 // pred_check
      _
    $region7: #{tpu_custom_call.1} parent=1 // pred_check_branch
      %30 = sbr.rel (0) target = $region9
    $region8: #{tpu_custom_call.1} parent=1 // pred_region
      %s32 = ssub.s32 128, 128
      %33 = vsyncadd [#allocation6], %s32
      %s35 = sshll.u32 [#allocation5], 4
      %s36 = int_to_ptr.vmem [resolvable:$true] %s35
      %38 = dma.hbm_to_vmem [thread:$0]  %s1, 128, %s36, [#allocation6]
    $region9: #{tpu_custom_call.1} parent=1 // pred_fallthru
      _
    // Predicated region
    $region10: #{tpu_custom_call.1} parent=1 // pred_check
      _
    $region11: #{tpu_custom_call.1} parent=1 // pred_check_branch
      %40 = sbr.rel (0) target = $region13
    $region12: #{tpu_custom_call.1} parent=1 // pred_region
      %s42 = ssub.s32 256, 256
      %43 = vsyncadd [#allocation6], %s42
      %s44 = sshll.u32 [#allocation7], 4
      %s45 = int_to_ptr.vmem [resolvable:$true] %s44
      %50 = dma.hbm_to_vmem [thread:$0]  %s2, 256, %s45, [#allocation6], 128, 128, 8
    $region13: #{tpu_custom_call.1} parent=1 // pred_fallthru
      _
    // Predicated region
    $region14: #{tpu_custom_call.1} parent=1 // pred_check
      _
    $region15: #{tpu_custom_call.1} parent=1 // pred_check_branch
      %52 = sbr.rel (0) target = $region17
    $region16: #{tpu_custom_call.1} parent=1 // pred_region
      %s54 = ssub.s32 256, 256
      %55 = vsyncadd [#allocation9], %s54
      %s56 = sshll.u32 [#allocation8], 4
      %s57 = int_to_ptr.vmem [resolvable:$true] %s56
      %62 = dma.hbm_to_vmem [thread:$0]  %s3, 256, %s57, [#allocation9], 128, 128, 8
    $region17: #{tpu_custom_call.1} parent=1 // pred_fallthru
      _
    // Predicated region
    $region18: #{tpu_custom_call.1} parent=1 // pred_check
      _
    $region19: #{tpu_custom_call.1} parent=1 // pred_check_branch
      %64 = sbr.rel (0) target = $region21
    $region20: #{tpu_custom_call.1} parent=1 // pred_region
      %s66 = ssub.s32 2048, 2048
      %67 = vsyncadd [#allocation9], %s66
      %s68 = sshll.u32 [#allocation10], 4
      %s69 = int_to_ptr.vmem [resolvable:$true] %s68
      %74 = dma.hbm_to_vmem [thread:$0]  %s4, 2048, %s69, [#allocation9], 128, 128, 8
    $region21: #{tpu_custom_call.1} parent=1 // pred_fallthru
      _
    // Predicated region
    $region22: #{tpu_custom_call.1} parent=1 // pred_check
      _
    $region23: #{tpu_custom_call.1} parent=1 // pred_check_branch
      %76 = sbr.rel (0) target = $region25
    $region24: #{tpu_custom_call.1} parent=1 // pred_region
      %s78 = ssub.s32 2048, 2048
      %79 = vsyncadd [#allocation12], %s78
      %s80 = sshll.u32 [#allocation11], 4
      %s81 = int_to_ptr.vmem [resolvable:$true] %s80
      %86 = dma.hbm_to_vmem [thread:$0]  %s5, 2048, %s81, [#allocation12], 128, 128, 8
    $region25: #{tpu_custom_call.1} parent=1 // pred_fallthru
      _
    // Predicated region
    $region26: #{tpu_custom_call.1} parent=1 // pred_check
      _
    $region27: #{tpu_custom_call.1} parent=1 // pred_check_branch
      %88 = sbr.rel (0) target = $region29
    $region28: #{tpu_custom_call.1} parent=1 // pred_region
      %s90 = ssub.s32 2048, 2048
      %91 = vsyncadd [#allocation12], %s90
      %s92 = sshll.u32 [#allocation13], 4
      %s93 = int_to_ptr.vmem [resolvable:$true] %s92
      %98 = dma.hbm_to_vmem [thread:$0]  %s6, 2048, %s93, [#allocation12], 128, 128, 8
    $region29: #{tpu_custom_call.1} parent=1 // pred_fallthru
      _
    // Predicated region
    $region30: #{tpu_custom_call.1} parent=1 // pred_check
      _
    $region31: #{tpu_custom_call.1} parent=1 // pred_check_branch
      %100 = sbr.rel (0) target = $region33
    $region32: #{tpu_custom_call.1} parent=1 // pred_region
      %s102 = ssub.s32 2048, 2048
      %103 = vsyncadd [#allocation15], %s102
      %s104 = sshll.u32 [#allocation14], 4
      %s105 = int_to_ptr.vmem [resolvable:$true] %s104
      %110 = dma.hbm_to_vmem [thread:$0]  %s7, 2048, %s105, [#allocation15], 128, 128, 8
    $region33: #{tpu_custom_call.1} parent=1 // pred_fallthru
      _
    // Predicated region
    $region34: #{tpu_custom_call.1} parent=1 // pred_check
      _
    $region35: #{tpu_custom_call.1} parent=1 // pred_check_branch
      %112 = sbr.rel (0) target = $region37
    $region36: #{tpu_custom_call.1} parent=1 // pred_region
      %113 = dma.done [#allocation3], 128
    $region37: #{tpu_custom_call.1} parent=1 // pred_fallthru
      _
    // Predicated region
    $region38: #{tpu_custom_call.1} parent=1 // pred_check
      _
    $region39: #{tpu_custom_call.1} parent=1 // pred_check_branch
      %115 = sbr.rel (0) target = $region41
    $region40: #{tpu_custom_call.1} parent=1 // pred_region
      %116 = dma.done [#allocation6], 128
    $region41: #{tpu_custom_call.1} parent=1 // pred_fallthru
      _
    // Predicated region
    $region42: #{tpu_custom_call.1} parent=1 // pred_check
      _
    $region43: #{tpu_custom_call.1} parent=1 // pred_check_branch
      %118 = sbr.rel (0) target = $region45
    $region44: #{tpu_custom_call.1} parent=1 // pred_region
      %119 = dma.done [#allocation6], 256
    $region45: #{tpu_custom_call.1} parent=1 // pred_fallthru
      _
    // Predicated region
    $region46: #{tpu_custom_call.1} parent=1 // pred_check
      _
    $region47: #{tpu_custom_call.1} parent=1 // pred_check_branch
      %121 = sbr.rel (0) target = $region49
    $region48: #{tpu_custom_call.1} parent=1 // pred_region
      %122 = dma.done [#allocation9], 256
    $region49: #{tpu_custom_call.1} parent=1 // pred_fallthru
      _
    // Predicated region
    $region50: #{tpu_custom_call.1} parent=1 // pred_check
      _
    $region51: #{tpu_custom_call.1} parent=1 // pred_check_branch
      %124 = sbr.rel (0) target = $region53
    $region52: #{tpu_custom_call.1} parent=1 // pred_region
      %125 = dma.done [#allocation9], 2048
    $region53: #{tpu_custom_call.1} parent=1 // pred_fallthru
      _
    // Predicated region
    $region54: #{tpu_custom_call.1} parent=1 // pred_check
      _
    $region55: #{tpu_custom_call.1} parent=1 // pred_check_branch
      %127 = sbr.rel (0) target = $region57
    $region56: #{tpu_custom_call.1} parent=1 // pred_region
      %128 = dma.done [#allocation12], 2048
    $region57: #{tpu_custom_call.1} parent=1 // pred_fallthru
      _
    // Predicated region
    $region58: #{tpu_custom_call.1} parent=1 // pred_check
      _
    $region59: #{tpu_custom_call.1} parent=1 // pred_check_branch
      %130 = sbr.rel (0) target = $region61
    $region60: #{tpu_custom_call.1} parent=1 // pred_region
      %131 = dma.done [#allocation12], 2048
    $region61: #{tpu_custom_call.1} parent=1 // pred_fallthru
      _
    // Predicated region
    $region62: #{tpu_custom_call.1} parent=1 // pred_check
      _
    $region63: #{tpu_custom_call.1} parent=1 // pred_check_branch
      %133 = sbr.rel (0) target = $region65
    $region64: #{tpu_custom_call.1} parent=1 // pred_region
      %134 = dma.done [#allocation15], 2048
    $region65: #{tpu_custom_call.1} parent=1 // pred_fallthru
      _
    %v135 = vld [vmem:[#allocation2] sm:$0xff]
    %v136 = vld [vmem:[#allocation7] sm:$0xff]
    %v137 = vld [vmem:[#allocation7 + $0x8] sm:$0xff]
    %vm138 = vcmask 130048
    %v140 = vsel %vm138, %v135, 0
    %142 = vmatprep.subr.mxu0 0.0
    %143 = vmatpush1.msra.mxu0 %v136
    %144 = vmatprep.subr.mxu0 0.0
    %145 = vmatpush1.msra.mxu0 %v137
    %146 = vmatprep.subr.mxu0 0.0
    %147 = vmatpush1.msra.mxu0 0.0
    %148 = vmatprep.subr.mxu0 0.0
    %149 = vmatpush1.msra.mxu0 0.0
    %150 = vmatprep.subr.mxu0 0.0
    %151 = vmatpush1.msra.mxu0 0.0
    %152 = vmatprep.subr.mxu0 0.0
    %153 = vmatpush1.msra.mxu0 0.0
    %154 = vmatprep.subr.mxu0 0.0
    %155 = vmatpush1.msra.mxu0 0.0
    %156 = vmatprep.subr.mxu0 0.0
    %157 = vmatpush1.msra.mxu0 0.0
    %158 = vmatprep.subr.mxu0 0.0
    %159 = vmatpush1.msra.mxu0 0.0
    %160 = vmatprep.subr.mxu0 0.0
    %161 = vmatpush1.msra.mxu0 0.0
    %162 = vmatprep.subr.mxu0 0.0
    %163 = vmatpush1.msra.mxu0 0.0
    %164 = vmatprep.subr.mxu0 0.0
    %165 = vmatpush1.msra.mxu0 0.0
    %166 = vmatprep.subr.mxu0 0.0
    %167 = vmatpush1.msra.mxu0 0.0
    %168 = vmatprep.subr.mxu0 0.0
    %169 = vmatpush1.msra.mxu0 0.0
    %170 = vmatprep.subr.mxu0 0.0
    %171 = vmatpush1.msra.mxu0 0.0
    %172 = vmatprep.subr.mxu0 0.0
    %173 = vmatpush1.msra.mxu0 0.0
    %174 = vmatprep.subr.mxu0 0.0
    %175 = vmatpush1.msra.mxu0 0.0
    %176 = vmatprep.subr.mxu0 0.0
    %177 = vmatpush1.msra.mxu0 0.0
    %178 = vmatprep.subr.mxu0 0.0
    %179 = vmatpush1.msra.mxu0 0.0
    %180 = vmatprep.subr.mxu0 0.0
    %181 = vmatpush1.msra.mxu0 0.0
    %182 = vmatprep.subr.mxu0 0.0
    %183 = vmatpush1.msra.mxu0 0.0
    %184 = vmatprep.subr.mxu0 0.0
    %185 = vmatpush1.msra.mxu0 0.0
    %186 = vmatprep.subr.mxu0 0.0
    %187 = vmatpush1.msra.mxu0 0.0
    %188 = vmatprep.subr.mxu0 0.0
    %189 = vmatpush1.msra.mxu0 0.0
    %190 = vmatprep.subr.mxu0 0.0
    %191 = vmatpush1.msra.mxu0 0.0
    %192 = vmatprep.subr.mxu0 0.0
    %193 = vmatpush1.msra.mxu0 0.0
    %194 = vmatprep.subr.mxu0 0.0
    %195 = vmatpush1.msra.mxu0 0.0
    %196 = vmatprep.subr.mxu0 0.0
    %197 = vmatpush1.msra.mxu0 0.0
    %198 = vmatprep.subr.mxu0 0.0
    %199 = vmatpush1.msra.mxu0 0.0
    %200 = vmatprep.subr.mxu0 0.0
    %201 = vmatpush1.msra.mxu0 0.0
    %202 = vmatprep.subr.mxu0 0.0
    %203 = vmatpush1.msra.mxu0 0.0
    %204 = vmatprep.subr.mxu0 0.0
    %205 = vmatpush1.msra.mxu0 0.0
    %206 = vmatprep.mubr.f32.mxu0 0.0
    %207 = vmatmul.mubr.f32.gmra.mrb[0].mxu0 %v140
    %v208 = vpop.f32.mrb[0].mxu0
    %v209 = vadd.f32 0.0, %v208
    %v210 = vpop.f32.mrb[0].mxu0
    %211 = vdwg.mxu0
    %v212 = vld [vmem:[#allocation5] sm:$0xff]
    %v213 = vld [vmem:[#allocation8] sm:$0xff]
    %v214 = vld [vmem:[#allocation8 + $0x8] sm:$0xff]
    %v216 = vsel %vm138, %v212, 0
    %218 = vmatprep.subr.mxu0 0.0
    %219 = vmatpush1.msra.mxu0 %v213
    %220 = vmatprep.subr.mxu0 0.0
    %221 = vmatpush1.msra.mxu0 %v214
    %222 = vmatprep.subr.mxu0 0.0
    %223 = vmatpush1.msra.mxu0 0.0
    %224 = vmatprep.subr.mxu0 0.0
    %225 = vmatpush1.msra.mxu0 0.0
    %226 = vmatprep.subr.mxu0 0.0
    %227 = vmatpush1.msra.mxu0 0.0
    %228 = vmatprep.subr.mxu0 0.0
    %229 = vmatpush1.msra.mxu0 0.0
    %230 = vmatprep.subr.mxu0 0.0
    %231 = vmatpush1.msra.mxu0 0.0
    %232 = vmatprep.subr.mxu0 0.0
    %233 = vmatpush1.msra.mxu0 0.0
    %234 = vmatprep.subr.mxu0 0.0
    %235 = vmatpush1.msra.mxu0 0.0
    %236 = vmatprep.subr.mxu0 0.0
    %237 = vmatpush1.msra.mxu0 0.0
    %238 = vmatprep.subr.mxu0 0.0
    %239 = vmatpush1.msra.mxu0 0.0
    %240 = vmatprep.subr.mxu0 0.0
    %241 = vmatpush1.msra.mxu0 0.0
    %242 = vmatprep.subr.mxu0 0.0
    %243 = vmatpush1.msra.mxu0 0.0
    %244 = vmatprep.subr.mxu0 0.0
    %245 = vmatpush1.msra.mxu0 0.0
    %246 = vmatprep.subr.mxu0 0.0
    %247 = vmatpush1.msra.mxu0 0.0
    %248 = vmatprep.subr.mxu0 0.0
    %249 = vmatpush1.msra.mxu0 0.0
    %250 = vmatprep.subr.mxu0 0.0
    %251 = vmatpush1.msra.mxu0 0.0
    %252 = vmatprep.subr.mxu0 0.0
    %253 = vmatpush1.msra.mxu0 0.0
    %254 = vmatprep.subr.mxu0 0.0
    %255 = vmatpush1.msra.mxu0 0.0
    %256 = vmatprep.subr.mxu0 0.0
    %257 = vmatpush1.msra.mxu0 0.0
    %258 = vmatprep.subr.mxu0 0.0
    %259 = vmatpush1.msra.mxu0 0.0
    %260 = vmatprep.subr.mxu0 0.0
    %261 = vmatpush1.msra.mxu0 0.0
    %262 = vmatprep.subr.mxu0 0.0
    %263 = vmatpush1.msra.mxu0 0.0
    %264 = vmatprep.subr.mxu0 0.0
    %265 = vmatpush1.msra.mxu0 0.0
    %266 = vmatprep.subr.mxu0 0.0
    %267 = vmatpush1.msra.mxu0 0.0
    %268 = vmatprep.subr.mxu0 0.0
    %269 = vmatpush1.msra.mxu0 0.0
    %270 = vmatprep.subr.mxu0 0.0
    %271 = vmatpush1.msra.mxu0 0.0
    %272 = vmatprep.subr.mxu0 0.0
    %273 = vmatpush1.msra.mxu0 0.0
    %274 = vmatprep.subr.mxu0 0.0
    %275 = vmatpush1.msra.mxu0 0.0
    %276 = vmatprep.subr.mxu0 0.0
    %277 = vmatpush1.msra.mxu0 0.0
    %278 = vmatprep.subr.mxu0 0.0
    %279 = vmatpush1.msra.mxu0 0.0
    %280 = vmatprep.subr.mxu0 0.0
    %281 = vmatpush1.msra.mxu0 0.0
    %282 = vmatprep.mubr.f32.mxu0 0.0
    %283 = vmatmul.mubr.f32.gmra.mrb[0].mxu0 %v216
    %v284 = vpop.f32.mrb[0].mxu0
    %v285 = vadd.f32 0.0, %v284
    %v286 = vpop.f32.mrb[0].mxu0
    %287 = vdwg.mxu0
    %v288 = vld [vmem:[#allocation10] sm:$0xff]
    %v289 = vld [vmem:[#allocation10 + $0x8] sm:$0xff]
    %v290 = vld [vmem:[#allocation10 + $0x10] sm:$0xff]
    %v291 = vld [vmem:[#allocation10 + $0x18] sm:$0xff]
    %v292 = vld [vmem:[#allocation10 + $0x20] sm:$0xff]
    %v293 = vld [vmem:[#allocation10 + $0x28] sm:$0xff]
    %v294 = vld [vmem:[#allocation10 + $0x30] sm:$0xff]
    %v295 = vld [vmem:[#allocation10 + $0x38] sm:$0xff]
    %v296 = vld [vmem:[#allocation10 + $0x40] sm:$0xff]
    %v297 = vld [vmem:[#allocation10 + $0x48] sm:$0xff]
    %v298 = vld [vmem:[#allocation10 + $0x50] sm:$0xff]
    %v299 = vld [vmem:[#allocation10 + $0x58] sm:$0xff]
    %v300 = vld [vmem:[#allocation10 + $0x60] sm:$0xff]
    %v301 = vld [vmem:[#allocation10 + $0x68] sm:$0xff]
    %v302 = vld [vmem:[#allocation10 + $0x70] sm:$0xff]
    %v303 = vld [vmem:[#allocation10 + $0x78] sm:$0xff]
    %v304 = vld [vmem:[#allocation11] sm:$0xff]
    %v305 = vld [vmem:[#allocation11 + $0x8] sm:$0xff]
    %v306 = vld [vmem:[#allocation11 + $0x10] sm:$0xff]
    %v307 = vld [vmem:[#allocation11 + $0x18] sm:$0xff]
    %v308 = vld [vmem:[#allocation11 + $0x20] sm:$0xff]
    %v309 = vld [vmem:[#allocation11 + $0x28] sm:$0xff]
    %v310 = vld [vmem:[#allocation11 + $0x30] sm:$0xff]
    %v311 = vld [vmem:[#allocation11 + $0x38] sm:$0xff]
    %v312 = vld [vmem:[#allocation11 + $0x40] sm:$0xff]
    %v313 = vld [vmem:[#allocation11 + $0x48] sm:$0xff]
    %v314 = vld [vmem:[#allocation11 + $0x50] sm:$0xff]
    %v315 = vld [vmem:[#allocation11 + $0x58] sm:$0xff]
    %v316 = vld [vmem:[#allocation11 + $0x60] sm:$0xff]
    %v317 = vld [vmem:[#allocation11 + $0x68] sm:$0xff]
    %v318 = vld [vmem:[#allocation11 + $0x70] sm:$0xff]
    %v319 = vld [vmem:[#allocation11 + $0x78] sm:$0xff]
    %320 = vmatprep.subr.mxu0 0.0
    %321 = vmatpush1.msra.mxu0 %v288
    %322 = vmatprep.subr.mxu0 0.0
    %323 = vmatpush1.msra.mxu0 %v289
    %324 = vmatprep.subr.mxu0 0.0
    %325 = vmatpush1.msra.mxu0 %v290
    %326 = vmatprep.subr.mxu0 0.0
    %327 = vmatpush1.msra.mxu0 %v291
    %328 = vmatprep.subr.mxu0 0.0
    %329 = vmatpush1.msra.mxu0 %v292
    %330 = vmatprep.subr.mxu0 0.0
    %331 = vmatpush1.msra.mxu0 %v293
    %332 = vmatprep.subr.mxu0 0.0
    %333 = vmatpush1.msra.mxu0 %v294
    %334 = vmatprep.subr.mxu0 0.0
    %335 = vmatpush1.msra.mxu0 %v295
    %336 = vmatprep.subr.mxu0 0.0
    %337 = vmatpush1.msra.mxu0 %v296
    %338 = vmatprep.subr.mxu0 0.0
    %339 = vmatpush1.msra.mxu0 %v297
    %340 = vmatprep.subr.mxu0 0.0
    %341 = vmatpush1.msra.mxu0 %v298
    %342 = vmatprep.subr.mxu0 0.0
    %343 = vmatpush1.msra.mxu0 %v299
    %344 = vmatprep.subr.mxu0 0.0
    %345 = vmatpush1.msra.mxu0 %v300
    %346 = vmatprep.subr.mxu0 0.0
    %347 = vmatpush1.msra.mxu0 %v301
    %348 = vmatprep.subr.mxu0 0.0
    %349 = vmatpush1.msra.mxu0 %v302
    %350 = vmatprep.subr.mxu0 0.0
    %351 = vmatpush1.msra.mxu0 %v303
    %352 = vmatprep.subr.mxu0 0.0
    %353 = vmatpush1.msra.mxu0 0.0
    %354 = vmatprep.subr.mxu0 0.0
    %355 = vmatpush1.msra.mxu0 0.0
    %356 = vmatprep.subr.mxu0 0.0
    %357 = vmatpush1.msra.mxu0 0.0
    %358 = vmatprep.subr.mxu0 0.0
    %359 = vmatpush1.msra.mxu0 0.0
    %360 = vmatprep.subr.mxu0 0.0
    %361 = vmatpush1.msra.mxu0 0.0
    %362 = vmatprep.subr.mxu0 0.0
    %363 = vmatpush1.msra.mxu0 0.0
    %364 = vmatprep.subr.mxu0 0.0
    %365 = vmatpush1.msra.mxu0 0.0
    %366 = vmatprep.subr.mxu0 0.0
    %367 = vmatpush1.msra.mxu0 0.0
    %368 = vmatprep.subr.mxu0 0.0
    %369 = vmatpush1.msra.mxu0 0.0
    %370 = vmatprep.subr.mxu0 0.0
    %371 = vmatpush1.msra.mxu0 0.0
    %372 = vmatprep.subr.mxu0 0.0
    %373 = vmatpush1.msra.mxu0 0.0
    %374 = vmatprep.subr.mxu0 0.0
    %375 = vmatpush1.msra.mxu0 0.0
    %376 = vmatprep.subr.mxu0 0.0
    %377 = vmatpush1.msra.mxu0 0.0
    %378 = vmatprep.subr.mxu0 0.0
    %379 = vmatpush1.msra.mxu0 0.0
    %380 = vmatprep.subr.mxu0 0.0
    %381 = vmatpush1.msra.mxu0 0.0
    %382 = vmatprep.subr.mxu0 0.0
    %383 = vmatpush1.msra.mxu0 0.0
    %384 = vmatprep.mubr.f32.mxu0 0.0
    %385 = vmatmul.mubr.f32.gmra.mrb[0].mxu0 %v209
    %v386 = vpop.f32.mrb[0].mxu0
    %v387 = vadd.f32 0.0, %v386
    %v388 = vpop.f32.mrb[0].mxu0
    %389 = vdwg.mxu0
    %390 = vmatprep.subr.mxu0 0.0
    %391 = vmatpush1.msra.mxu0 %v304
    %392 = vmatprep.subr.mxu0 0.0
    %393 = vmatpush1.msra.mxu0 %v305
    %394 = vmatprep.subr.mxu0 0.0
    %395 = vmatpush1.msra.mxu0 %v306
    %396 = vmatprep.subr.mxu0 0.0
    %397 = vmatpush1.msra.mxu0 %v307
    %398 = vmatprep.subr.mxu0 0.0
    %399 = vmatpush1.msra.mxu0 %v308
    %400 = vmatprep.subr.mxu0 0.0
    %401 = vmatpush1.msra.mxu0 %v309
    %402 = vmatprep.subr.mxu0 0.0
    %403 = vmatpush1.msra.mxu0 %v310
    %404 = vmatprep.subr.mxu0 0.0
    %405 = vmatpush1.msra.mxu0 %v311
    %406 = vmatprep.subr.mxu0 0.0
    %407 = vmatpush1.msra.mxu0 %v312
    %408 = vmatprep.subr.mxu0 0.0
    %409 = vmatpush1.msra.mxu0 %v313
    %410 = vmatprep.subr.mxu0 0.0
    %411 = vmatpush1.msra.mxu0 %v314
    %412 = vmatprep.subr.mxu0 0.0
    %413 = vmatpush1.msra.mxu0 %v315
    %414 = vmatprep.subr.mxu0 0.0
    %415 = vmatpush1.msra.mxu0 %v316
    %416 = vmatprep.subr.mxu0 0.0
    %417 = vmatpush1.msra.mxu0 %v317
    %418 = vmatprep.subr.mxu0 0.0
    %419 = vmatpush1.msra.mxu0 %v318
    %420 = vmatprep.subr.mxu0 0.0
    %421 = vmatpush1.msra.mxu0 %v319
    %422 = vmatprep.subr.mxu0 0.0
    %423 = vmatpush1.msra.mxu0 0.0
    %424 = vmatprep.subr.mxu0 0.0
    %425 = vmatpush1.msra.mxu0 0.0
    %426 = vmatprep.subr.mxu0 0.0
    %427 = vmatpush1.msra.mxu0 0.0
    %428 = vmatprep.subr.mxu0 0.0
    %429 = vmatpush1.msra.mxu0 0.0
    %430 = vmatprep.subr.mxu0 0.0
    %431 = vmatpush1.msra.mxu0 0.0
    %432 = vmatprep.subr.mxu0 0.0
    %433 = vmatpush1.msra.mxu0 0.0
    %434 = vmatprep.subr.mxu0 0.0
    %435 = vmatpush1.msra.mxu0 0.0
    %436 = vmatprep.subr.mxu0 0.0
    %437 = vmatpush1.msra.mxu0 0.0
    %438 = vmatprep.subr.mxu0 0.0
    %439 = vmatpush1.msra.mxu0 0.0
    %440 = vmatprep.subr.mxu0 0.0
    %441 = vmatpush1.msra.mxu0 0.0
    %442 = vmatprep.subr.mxu0 0.0
    %443 = vmatpush1.msra.mxu0 0.0
    %444 = vmatprep.subr.mxu0 0.0
    %445 = vmatpush1.msra.mxu0 0.0
    %446 = vmatprep.subr.mxu0 0.0
    %447 = vmatpush1.msra.mxu0 0.0
    %448 = vmatprep.subr.mxu0 0.0
    %449 = vmatpush1.msra.mxu0 0.0
    %450 = vmatprep.subr.mxu0 0.0
    %451 = vmatpush1.msra.mxu0 0.0
    %452 = vmatprep.subr.mxu0 0.0
    %453 = vmatpush1.msra.mxu0 0.0
    %454 = vmatprep.mubr.f32.mxu0 0.0
    %455 = vmatmul.mubr.f32.gmra.mrb[0].mxu0 %v209
    %v456 = vpop.f32.mrb[0].mxu0
    %v457 = vadd.f32 0.0, %v456
    %v458 = vpop.f32.mrb[0].mxu0
    %459 = vdwg.mxu0
    %v460 = vsub.f32 0.0, %v457
    %461 = vmatprep.subr.mxu0 0.0
    %462 = vmatpush1.msra.mxu0 %v288
    %463 = vmatprep.subr.mxu0 0.0
    %464 = vmatpush1.msra.mxu0 %v289
    %465 = vmatprep.subr.mxu0 0.0
    %466 = vmatpush1.msra.mxu0 %v290
    %467 = vmatprep.subr.mxu0 0.0
    %468 = vmatpush1.msra.mxu0 %v291
    %469 = vmatprep.subr.mxu0 0.0
    %470 = vmatpush1.msra.mxu0 %v292
    %471 = vmatprep.subr.mxu0 0.0
    %472 = vmatpush1.msra.mxu0 %v293
    %473 = vmatprep.subr.mxu0 0.0
    %474 = vmatpush1.msra.mxu0 %v294
    %475 = vmatprep.subr.mxu0 0.0
    %476 = vmatpush1.msra.mxu0 %v295
    %477 = vmatprep.subr.mxu0 0.0
    %478 = vmatpush1.msra.mxu0 %v296
    %479 = vmatprep.subr.mxu0 0.0
    %480 = vmatpush1.msra.mxu0 %v297
    %481 = vmatprep.subr.mxu0 0.0
    %482 = vmatpush1.msra.mxu0 %v298
    %483 = vmatprep.subr.mxu0 0.0
    %484 = vmatpush1.msra.mxu0 %v299
    %485 = vmatprep.subr.mxu0 0.0
    %486 = vmatpush1.msra.mxu0 %v300
    %487 = vmatprep.subr.mxu0 0.0
    %488 = vmatpush1.msra.mxu0 %v301
    %489 = vmatprep.subr.mxu0 0.0
    %490 = vmatpush1.msra.mxu0 %v302
    %491 = vmatprep.subr.mxu0 0.0
    %492 = vmatpush1.msra.mxu0 %v303
    %493 = vmatprep.subr.mxu0 0.0
    %494 = vmatpush1.msra.mxu0 0.0
    %495 = vmatprep.subr.mxu0 0.0
    %496 = vmatpush1.msra.mxu0 0.0
    %497 = vmatprep.subr.mxu0 0.0
    %498 = vmatpush1.msra.mxu0 0.0
    %499 = vmatprep.subr.mxu0 0.0
    %500 = vmatpush1.msra.mxu0 0.0
    %501 = vmatprep.subr.mxu0 0.0
    %502 = vmatpush1.msra.mxu0 0.0
    %503 = vmatprep.subr.mxu0 0.0
    %504 = vmatpush1.msra.mxu0 0.0
    %505 = vmatprep.subr.mxu0 0.0
    %506 = vmatpush1.msra.mxu0 0.0
    %507 = vmatprep.subr.mxu0 0.0
    %508 = vmatpush1.msra.mxu0 0.0
    %509 = vmatprep.subr.mxu0 0.0
    %510 = vmatpush1.msra.mxu0 0.0
    %511 = vmatprep.subr.mxu0 0.0
    %512 = vmatpush1.msra.mxu0 0.0
    %513 = vmatprep.subr.mxu0 0.0
    %514 = vmatpush1.msra.mxu0 0.0
    %515 = vmatprep.subr.mxu0 0.0
    %516 = vmatpush1.msra.mxu0 0.0
    %517 = vmatprep.subr.mxu0 0.0
    %518 = vmatpush1.msra.mxu0 0.0
    %519 = vmatprep.subr.mxu0 0.0
    %520 = vmatpush1.msra.mxu0 0.0
    %521 = vmatprep.subr.mxu0 0.0
    %522 = vmatpush1.msra.mxu0 0.0
    %523 = vmatprep.subr.mxu0 0.0
    %524 = vmatpush1.msra.mxu0 0.0
    %525 = vmatprep.mubr.f32.mxu0 0.0
    %526 = vmatmul.mubr.f32.gmra.mrb[0].mxu0 %v285
    %v527 = vpop.f32.mrb[0].mxu0
    %v528 = vadd.f32 0.0, %v527
    %v529 = vpop.f32.mrb[0].mxu0
    %530 = vdwg.mxu0
    %531 = vmatprep.subr.mxu0 0.0
    %532 = vmatpush1.msra.mxu0 %v304
    %533 = vmatprep.subr.mxu0 0.0
    %534 = vmatpush1.msra.mxu0 %v305
    %535 = vmatprep.subr.mxu0 0.0
    %536 = vmatpush1.msra.mxu0 %v306
    %537 = vmatprep.subr.mxu0 0.0
    %538 = vmatpush1.msra.mxu0 %v307
    %539 = vmatprep.subr.mxu0 0.0
    %540 = vmatpush1.msra.mxu0 %v308
    %541 = vmatprep.subr.mxu0 0.0
    %542 = vmatpush1.msra.mxu0 %v309
    %543 = vmatprep.subr.mxu0 0.0
    %544 = vmatpush1.msra.mxu0 %v310
    %545 = vmatprep.subr.mxu0 0.0
    %546 = vmatpush1.msra.mxu0 %v311
    %547 = vmatprep.subr.mxu0 0.0
    %548 = vmatpush1.msra.mxu0 %v312
    %549 = vmatprep.subr.mxu0 0.0
    %550 = vmatpush1.msra.mxu0 %v313
    %551 = vmatprep.subr.mxu0 0.0
    %552 = vmatpush1.msra.mxu0 %v314
    %553 = vmatprep.subr.mxu0 0.0
    %554 = vmatpush1.msra.mxu0 %v315
    %555 = vmatprep.subr.mxu0 0.0
    %556 = vmatpush1.msra.mxu0 %v316
    %557 = vmatprep.subr.mxu0 0.0
    %558 = vmatpush1.msra.mxu0 %v317
    %559 = vmatprep.subr.mxu0 0.0
    %560 = vmatpush1.msra.mxu0 %v318
    %561 = vmatprep.subr.mxu0 0.0
    %562 = vmatpush1.msra.mxu0 %v319
    %563 = vmatprep.subr.mxu0 0.0
    %564 = vmatpush1.msra.mxu0 0.0
    %565 = vmatprep.subr.mxu0 0.0
    %566 = vmatpush1.msra.mxu0 0.0
    %567 = vmatprep.subr.mxu0 0.0
    %568 = vmatpush1.msra.mxu0 0.0
    %569 = vmatprep.subr.mxu0 0.0
    %570 = vmatpush1.msra.mxu0 0.0
    %571 = vmatprep.subr.mxu0 0.0
    %572 = vmatpush1.msra.mxu0 0.0
    %573 = vmatprep.subr.mxu0 0.0
    %574 = vmatpush1.msra.mxu0 0.0
    %575 = vmatprep.subr.mxu0 0.0
    %576 = vmatpush1.msra.mxu0 0.0
    %577 = vmatprep.subr.mxu0 0.0
    %578 = vmatpush1.msra.mxu0 0.0
    %579 = vmatprep.subr.mxu0 0.0
    %580 = vmatpush1.msra.mxu0 0.0
    %581 = vmatprep.subr.mxu0 0.0
    %582 = vmatpush1.msra.mxu0 0.0
    %583 = vmatprep.subr.mxu0 0.0
    %584 = vmatpush1.msra.mxu0 0.0
    %585 = vmatprep.subr.mxu0 0.0
    %586 = vmatpush1.msra.mxu0 0.0
    %587 = vmatprep.subr.mxu0 0.0
    %588 = vmatpush1.msra.mxu0 0.0
    %589 = vmatprep.subr.mxu0 0.0
    %590 = vmatpush1.msra.mxu0 0.0
    %591 = vmatprep.subr.mxu0 0.0
    %592 = vmatpush1.msra.mxu0 0.0
    %593 = vmatprep.subr.mxu0 0.0
    %594 = vmatpush1.msra.mxu0 0.0
    %595 = vmatprep.mubr.f32.mxu0 0.0
    %596 = vmatmul.mubr.f32.gmra.mrb[0].mxu0 %v285
    %v597 = vpop.f32.mrb[0].mxu0
    %v598 = vadd.f32 0.0, %v597
    %v599 = vpop.f32.mrb[0].mxu0
    %600 = vdwg.mxu0
    %v601 = vsub.f32 0.0, %v598
    %v602 = vmul.f32 %v387, %v528
    %v603 = vmul.f32 %v460, %v601
    %v604 = vsub.f32 %v602, %v603
    %v605 = vmul.f32 %v387, %v601
    %v606 = vmul.f32 %v460, %v528
    %v607 = vadd.f32 %v605, %v606
    %v608 = vld [vmem:[#allocation13] sm:$0xff]
    %v609 = vld [vmem:[#allocation13 + $0x8] sm:$0xff]
    %v610 = vld [vmem:[#allocation13 + $0x10] sm:$0xff]
    %v611 = vld [vmem:[#allocation13 + $0x18] sm:$0xff]
    %v612 = vld [vmem:[#allocation13 + $0x20] sm:$0xff]
    %v613 = vld [vmem:[#allocation13 + $0x28] sm:$0xff]
    %v614 = vld [vmem:[#allocation13 + $0x30] sm:$0xff]
    %v615 = vld [vmem:[#allocation13 + $0x38] sm:$0xff]
    %v616 = vld [vmem:[#allocation13 + $0x40] sm:$0xff]
    %v617 = vld [vmem:[#allocation13 + $0x48] sm:$0xff]
    %v618 = vld [vmem:[#allocation13 + $0x50] sm:$0xff]
    %v619 = vld [vmem:[#allocation13 + $0x58] sm:$0xff]
    %v620 = vld [vmem:[#allocation13 + $0x60] sm:$0xff]
    %v621 = vld [vmem:[#allocation13 + $0x68] sm:$0xff]
    %v622 = vld [vmem:[#allocation13 + $0x70] sm:$0xff]
    %v623 = vld [vmem:[#allocation13 + $0x78] sm:$0xff]
    %624 = vmatprep.subr.mxu0 0.0
    %625 = vmatpush1.msra.mxu0 %v608
    %626 = vmatprep.subr.mxu0 0.0
    %627 = vmatpush1.msra.mxu0 %v609
    %628 = vmatprep.subr.mxu0 0.0
    %629 = vmatpush1.msra.mxu0 %v610
    %630 = vmatprep.subr.mxu0 0.0
    %631 = vmatpush1.msra.mxu0 %v611
    %632 = vmatprep.subr.mxu0 0.0
    %633 = vmatpush1.msra.mxu0 %v612
    %634 = vmatprep.subr.mxu0 0.0
    %635 = vmatpush1.msra.mxu0 %v613
    %636 = vmatprep.subr.mxu0 0.0
    %637 = vmatpush1.msra.mxu0 %v614
    %638 = vmatprep.subr.mxu0 0.0
    %639 = vmatpush1.msra.mxu0 %v615
    %640 = vmatprep.subr.mxu0 0.0
    %641 = vmatpush1.msra.mxu0 %v616
    %642 = vmatprep.subr.mxu0 0.0
    %643 = vmatpush1.msra.mxu0 %v617
    %644 = vmatprep.subr.mxu0 0.0
    %645 = vmatpush1.msra.mxu0 %v618
    %646 = vmatprep.subr.mxu0 0.0
    %647 = vmatpush1.msra.mxu0 %v619
    %648 = vmatprep.subr.mxu0 0.0
    %649 = vmatpush1.msra.mxu0 %v620
    %650 = vmatprep.subr.mxu0 0.0
    %651 = vmatpush1.msra.mxu0 %v621
    %652 = vmatprep.subr.mxu0 0.0
    %653 = vmatpush1.msra.mxu0 %v622
    %654 = vmatprep.subr.mxu0 0.0
    %655 = vmatpush1.msra.mxu0 %v623
    %656 = vmatprep.subr.mxu0 0.0
    %657 = vmatpush1.msra.mxu0 0.0
    %658 = vmatprep.subr.mxu0 0.0
    %659 = vmatpush1.msra.mxu0 0.0
    %660 = vmatprep.subr.mxu0 0.0
    %661 = vmatpush1.msra.mxu0 0.0
    %662 = vmatprep.subr.mxu0 0.0
    %663 = vmatpush1.msra.mxu0 0.0
    %664 = vmatprep.subr.mxu0 0.0
    %665 = vmatpush1.msra.mxu0 0.0
    %666 = vmatprep.subr.mxu0 0.0
    %667 = vmatpush1.msra.mxu0 0.0
    %668 = vmatprep.subr.mxu0 0.0
    %669 = vmatpush1.msra.mxu0 0.0
    %670 = vmatprep.subr.mxu0 0.0
    %671 = vmatpush1.msra.mxu0 0.0
    %672 = vmatprep.subr.mxu0 0.0
    %673 = vmatpush1.msra.mxu0 0.0
    %674 = vmatprep.subr.mxu0 0.0
    %675 = vmatpush1.msra.mxu0 0.0
    %676 = vmatprep.subr.mxu0 0.0
    %677 = vmatpush1.msra.mxu0 0.0
    %678 = vmatprep.subr.mxu0 0.0
    %679 = vmatpush1.msra.mxu0 0.0
    %680 = vmatprep.subr.mxu0 0.0
    %681 = vmatpush1.msra.mxu0 0.0
    %682 = vmatprep.subr.mxu0 0.0
    %683 = vmatpush1.msra.mxu0 0.0
    %684 = vmatprep.subr.mxu0 0.0
    %685 = vmatpush1.msra.mxu0 0.0
    %686 = vmatprep.subr.mxu0 0.0
    %687 = vmatpush1.msra.mxu0 0.0
    %688 = vmatprep.mubr.f32.mxu0 0.0
    %689 = vmatmul.mubr.f32.gmra.mrb[0].mxu0 %v604
    %v690 = vpop.f32.mrb[0].mxu0
    %v691 = vadd.f32 0.0, %v690
    %v692 = vpop.f32.mrb[0].mxu0
    %693 = vdwg.mxu0
    %v694 = vld [vmem:[#allocation14] sm:$0xff]
    %v695 = vld [vmem:[#allocation14 + $0x8] sm:$0xff]
    %v696 = vld [vmem:[#allocation14 + $0x10] sm:$0xff]
    %v697 = vld [vmem:[#allocation14 + $0x18] sm:$0xff]
    %v698 = vld [vmem:[#allocation14 + $0x20] sm:$0xff]
    %v699 = vld [vmem:[#allocation14 + $0x28] sm:$0xff]
    %v700 = vld [vmem:[#allocation14 + $0x30] sm:$0xff]
    %v701 = vld [vmem:[#allocation14 + $0x38] sm:$0xff]
    %v702 = vld [vmem:[#allocation14 + $0x40] sm:$0xff]
    %v703 = vld [vmem:[#allocation14 + $0x48] sm:$0xff]
    %v704 = vld [vmem:[#allocation14 + $0x50] sm:$0xff]
    %v705 = vld [vmem:[#allocation14 + $0x58] sm:$0xff]
    %v706 = vld [vmem:[#allocation14 + $0x60] sm:$0xff]
    %v707 = vld [vmem:[#allocation14 + $0x68] sm:$0xff]
    %v708 = vld [vmem:[#allocation14 + $0x70] sm:$0xff]
    %v709 = vld [vmem:[#allocation14 + $0x78] sm:$0xff]
    %710 = vmatprep.subr.mxu0 0.0
    %711 = vmatpush1.msra.mxu0 %v694
    %712 = vmatprep.subr.mxu0 0.0
    %713 = vmatpush1.msra.mxu0 %v695
    %714 = vmatprep.subr.mxu0 0.0
    %715 = vmatpush1.msra.mxu0 %v696
    %716 = vmatprep.subr.mxu0 0.0
    %717 = vmatpush1.msra.mxu0 %v697
    %718 = vmatprep.subr.mxu0 0.0
    %719 = vmatpush1.msra.mxu0 %v698
    %720 = vmatprep.subr.mxu0 0.0
    %721 = vmatpush1.msra.mxu0 %v699
    %722 = vmatprep.subr.mxu0 0.0
    %723 = vmatpush1.msra.mxu0 %v700
    %724 = vmatprep.subr.mxu0 0.0
    %725 = vmatpush1.msra.mxu0 %v701
    %726 = vmatprep.subr.mxu0 0.0
    %727 = vmatpush1.msra.mxu0 %v702
    %728 = vmatprep.subr.mxu0 0.0
    %729 = vmatpush1.msra.mxu0 %v703
    %730 = vmatprep.subr.mxu0 0.0
    %731 = vmatpush1.msra.mxu0 %v704
    %732 = vmatprep.subr.mxu0 0.0
    %733 = vmatpush1.msra.mxu0 %v705
    %734 = vmatprep.subr.mxu0 0.0
    %735 = vmatpush1.msra.mxu0 %v706
    %736 = vmatprep.subr.mxu0 0.0
    %737 = vmatpush1.msra.mxu0 %v707
    %738 = vmatprep.subr.mxu0 0.0
    %739 = vmatpush1.msra.mxu0 %v708
    %740 = vmatprep.subr.mxu0 0.0
    %741 = vmatpush1.msra.mxu0 %v709
    %742 = vmatprep.subr.mxu0 0.0
    %743 = vmatpush1.msra.mxu0 0.0
    %744 = vmatprep.subr.mxu0 0.0
    %745 = vmatpush1.msra.mxu0 0.0
    %746 = vmatprep.subr.mxu0 0.0
    %747 = vmatpush1.msra.mxu0 0.0
    %748 = vmatprep.subr.mxu0 0.0
    %749 = vmatpush1.msra.mxu0 0.0
    %750 = vmatprep.subr.mxu0 0.0
    %751 = vmatpush1.msra.mxu0 0.0
    %752 = vmatprep.subr.mxu0 0.0
    %753 = vmatpush1.msra.mxu0 0.0
    %754 = vmatprep.subr.mxu0 0.0
    %755 = vmatpush1.msra.mxu0 0.0
    %756 = vmatprep.subr.mxu0 0.0
    %757 = vmatpush1.msra.mxu0 0.0
    %758 = vmatprep.subr.mxu0 0.0
    %759 = vmatpush1.msra.mxu0 0.0
    %760 = vmatprep.subr.mxu0 0.0
    %761 = vmatpush1.msra.mxu0 0.0
    %762 = vmatprep.subr.mxu0 0.0
    %763 = vmatpush1.msra.mxu0 0.0
    %764 = vmatprep.subr.mxu0 0.0
    %765 = vmatpush1.msra.mxu0 0.0
    %766 = vmatprep.subr.mxu0 0.0
    %767 = vmatpush1.msra.mxu0 0.0
    %768 = vmatprep.subr.mxu0 0.0
    %769 = vmatpush1.msra.mxu0 0.0
    %770 = vmatprep.subr.mxu0 0.0
    %771 = vmatpush1.msra.mxu0 0.0
    %772 = vmatprep.subr.mxu0 0.0
    %773 = vmatpush1.msra.mxu0 0.0
    %774 = vmatprep.mubr.f32.mxu0 0.0
    %775 = vmatmul.mubr.f32.gmra.mrb[0].mxu0 %v607
    %v776 = vpop.f32.mrb[0].mxu0
    %v777 = vadd.f32 0.0, %v776
    %v778 = vpop.f32.mrb[0].mxu0
    %779 = vdwg.mxu0
    %v780 = vsub.f32 %v691, %v777
    %781 = vst [vmem:[#allocation16] sm:$0xff] %v780
    // Predicated region
    $region66: #{tpu_custom_call.1} parent=1 // pred_check
      _
    $region67: #{tpu_custom_call.1} parent=1 // pred_check_branch
      %783 = sbr.rel (0) target = $region69
    $region68: #{tpu_custom_call.1} parent=1 // pred_region
      %s785 = ssub.s32 128, 128
      %786 = vsyncadd [#allocation4], %s785
      %s788 = sshll.u32 [#allocation16], 4
      %s789 = int_to_ptr.vmem [resolvable:$true] %s788
      %791 = dma.vmem_to_hbm [thread:$0]  %s789, 128, %s8, [#allocation4]
    $region69: #{tpu_custom_call.1} parent=1 // pred_fallthru
      _
    // Predicated region
    $region70: #{tpu_custom_call.1} parent=1 // pred_check
      _
    $region71: #{tpu_custom_call.1} parent=1 // pred_check_branch
      %793 = sbr.rel (0) target = $region73
    $region72: #{tpu_custom_call.1} parent=1 // pred_region
      %794 = dma.done [#allocation4], 128
    $region73: #{tpu_custom_call.1} parent=1 // pred_fallthru
      _
    %795 = vsyncpa [#allocation3], 1
    %796 = vsyncpa [#allocation6], 1
    %797 = vsyncpa [#allocation9], 1
    %798 = vsyncpa [#allocation12], 1
    %799 = vsyncpa [#allocation15], 1
    %800 = vsyncpa [#allocation4], 1

</llo_original>
